<compile_context>
chip_gen: v5e
topology: v5e:2x2
jax: 0.10.0
libtpu: 0.0.40
codegen_flags: <defaults>
</compile_context>

<pallas_src>
import functools
import math

import jax
import jax.numpy as jnp
from jax.experimental import pallas as pl
from jax.experimental.pallas import tpu as pltpu

# Module hyper-parameters (deterministic, from __init__ defaults).
OMEGA = 14.0
THETA = 0.5
EPSILON = 1.0
ALPHA = 2.1
WEIGHT = 10.0

RATIO = THETA / EPSILON          # 0.5
LN_RATIO = math.log(RATIO)       # ln(0.5)
INV_RATIO = 1.0 / RATIO          # 2.0
INV_OMEGA = 1.0 / OMEGA

LANES = 128                      # vreg lane width
SUBLANES = 8                     # f32 sublane tile height
SLAB = 16                        # rows per inner step (bf16 packed-tile height)
TINY = 1e-30                     # clamp for log(delta/omega) when delta == 0


def _device_params():
    """Returns (tensorcores_per_chip, max_tile_rows) for the default backend."""
    try:
        kind = jax.devices()[0].device_kind.lower()
    except Exception:
        kind = ""
    if "v7" in kind:
        return 2, 4096           # 2 TCs/chip, 3.2 TB/s HBM -> bigger tiles
    if "v4" in kind or "v5p" in kind:
        return 2, 2048           # megacore: 2 TCs share the "parallel" axis
    return 1, 2048               # v5e / v6e: single TensorCore


def _awl_kernel(pred_ref, target_ref, wmap_ref, acc_ref, *,
                n_rows, tile_rows, n_inner):
    """Adaptive-wing loss over one (tile_rows, 128) block, folded into an
    (8, 128) per-chunk partial-sum slab."""
    p_id = pl.program_id(0)   # parallel chunk (megacore / dual-TC axis)
    j_id = pl.program_id(1)   # reduction step within the chunk

    @pl.when(j_id == 0)
    def _():
        acc_ref[...] = jnp.zeros_like(acc_ref)

    # UNclamped logical first row of this block (pairs with the clamped DMA
    # index_map in the wrapper: logically-OOB blocks are skipped below).
    row0 = (p_id * n_inner + j_id) * tile_rows
    n_slabs = tile_rows // SLAB

    def _slab_loss(r):
        """Elementwise loss for the (SLAB, 128) slab starting at block row r."""
        y = target_ref[pl.ds(r, SLAB), :].astype(jnp.float32)
        y_hat = pred_ref[pl.ds(r, SLAB), :].astype(jnp.float32)
        w = WEIGHT * (wmap_ref[pl.ds(r, SLAB), :].astype(jnp.float32) + 1.0)

        delta = jnp.abs(y - y_hat)
        expo = ALPHA - y
        small = delta < THETA

        # Shared-transcendental form of the two branches:
        #   branch1 (delta <  theta): p = (delta/omega)^expo, loss = omega*log(1+p)
        #   branch2 (delta >= theta): p = (theta/eps)^expo,
        #       A = omega/(1+p)*expo*p/ratio * (1/eps),   [eps == 1 dropped]
        #       loss = A*delta - C = A*(delta-theta) + omega*log(1+p)
        t = jnp.where(small,
                      jnp.log(jnp.maximum(delta * INV_OMEGA, TINY)),
                      LN_RATIO)
        p = jnp.exp(expo * t)
        logterm = OMEGA * jnp.log(1.0 + p)
        # Exact reciprocal: approx=True perturbs the sum beyond the 1e-5 check.
        a_coeff = OMEGA * pl.reciprocal(1.0 + p) * expo * (p * INV_RATIO)
        loss2 = a_coeff * (delta - THETA) + logterm

        return jnp.where(small, logterm, loss2) * w

    def _fold(x):   # (SLAB, 128) f32 -> (8, 128) partial sums (pure VPU adds)
        return x.reshape(SLAB // SUBLANES, SUBLANES, LANES).sum(axis=0)

    @pl.when(row0 < n_rows)            # skip clamped-duplicate / OOB blocks
    def _():

        @pl.when(row0 + tile_rows <= n_rows)    # full interior block: no mask
        def _():
            def body(i, acc):
                r = pl.multiple_of(i * SLAB, SLAB)
                return acc + _fold(_slab_loss(r))
            acc_ref[...] += jax.lax.fori_loop(
                0, n_slabs, body,
                jnp.zeros((SUBLANES, LANES), jnp.float32))[None]

        @pl.when(row0 + tile_rows > n_rows)     # ragged tail block: mask rows
        def _():
            def body(i, acc):
                r = pl.multiple_of(i * SLAB, SLAB)
                loss = _slab_loss(r)
                ridx = (jax.lax.broadcasted_iota(jnp.int32, loss.shape, 0)
                        + (row0 + r))
                loss = jnp.where(ridx < n_rows, loss, 0.0)
                return acc + _fold(loss)
            acc_ref[...] += jax.lax.fori_loop(
                0, n_slabs, body,
                jnp.zeros((SUBLANES, LANES), jnp.float32))[None]


def adaptive_wing_loss(pred, target, weight_map):
    """pred/target/weight_map: (B, N, H, W) float arrays (f32/bf16/f16).
    Returns the scalar mean adaptive-wing loss (float32)."""
    n_elems = pred.size
    n_tc, max_tile_rows = _device_params()

    def _flatten(x):
        # Keep the native dtype: bf16/f16 inputs are upcast inside the kernel,
        # halving DMA bytes vs. a wrapper-side f32 copy through HBM.
        x = x.reshape(-1)
        rem = x.shape[0] % LANES
        if rem:
            # TODO(synk): lane-tail pad still materializes one copy; only hit
            # when B*N*H*W is not a multiple of 128 (rare for heatmap shapes).
            x = jnp.pad(x, (0, LANES - rem))
        return x.reshape(-1, LANES)

    p2 = _flatten(pred)
    t2 = _flatten(target)
    w2 = _flatten(weight_map)

    n_rows = p2.shape[0]
    tile_rows = min(max_tile_rows, ((n_rows + SLAB - 1) // SLAB) * SLAB)
    n_blocks = pl.cdiv(n_rows, tile_rows)
    n_par = max(1, min(n_tc, n_blocks))
    n_inner = pl.cdiv(n_blocks, n_par)

    def in_map(pi, ji):
        # Clamp so the DMA never starts fully out of bounds; logically-OOB
        # blocks are skipped inside the kernel, which uses the UNclamped row0.
        return (jnp.minimum(pi * n_inner + ji, n_blocks - 1), 0)

    in_spec = pl.BlockSpec((tile_rows, LANES), in_map)
    out_spec = pl.BlockSpec((1, SUBLANES, LANES), lambda pi, ji: (pi, 0, 0))

    kernel = functools.partial(
        _awl_kernel, n_rows=n_rows, tile_rows=tile_rows, n_inner=n_inner)

    partial = pl.pallas_call(
        kernel,
        out_shape=jax.ShapeDtypeStruct((n_par, SUBLANES, LANES), jnp.float32),
        grid=(n_par, n_inner),
        in_specs=[in_spec, in_spec, in_spec],
        out_specs=out_spec,
        compiler_params=pltpu.CompilerParams(
            dimension_semantics=("parallel", "arbitrary"),
            vmem_limit_bytes=32 * 1024 * 1024),
    )(p2, t2, w2)

    # mask1/mask2 partition all elements, so the denominator is the count.
    return jnp.sum(partial) / n_elems


def _reference(pred, target, weight_map):
    """Pure-JAX reference mirroring the PyTorch forward (computed in f32)."""
    pred = pred.astype(jnp.float32)
    target = target.astype(jnp.float32)
    weight_map = weight_map.astype(jnp.float32)
    w = WEIGHT * (weight_map + 1.0)
    y = target
    delta = jnp.abs(y - pred)
    e = ALPHA - y
    ratio = THETA / EPSILON
    loss1 = OMEGA * jnp.log(1.0 + jnp.power(delta / OMEGA, e))
    p = jnp.power(ratio, e)
    A = OMEGA * (1.0 / (1.0 + p)) * e * jnp.power(ratio, e - 1.0) * (1.0 / EPSILON)
    C = THETA * A - OMEGA * jnp.log(1.0 + p)
    loss2 = A * delta - C
    loss = jnp.where(delta < THETA, loss1, loss2) * w
    return jnp.sum(loss) / pred.size


if __name__ == "__main__":
    key = jax.random.PRNGKey(0)
    k1, k2, k3, k4, k5, k6 = jax.random.split(key, 6)

    # Primary check: heatmap-style (B, N, H, W) float32 inputs.
    B, N, H, W = 2, 4, 16, 16
    pred = jax.random.uniform(k1, (B, N, H, W), dtype=jnp.float32)
    target = jax.random.uniform(k2, (B, N, H, W), dtype=jnp.float32)
    weight_map = jax.random.uniform(k3, (B, N, H, W), dtype=jnp.float32)

    out = jax.block_until_ready(adaptive_wing_loss(pred, target, weight_map))
    ref = _reference(pred, target, weight_map)
    assert jnp.isfinite(out), "non-finite loss"
    assert jnp.allclose(out, ref, rtol=1e-5, atol=1e-5), (out, ref)

    # Secondary check: odd shape (lane-pad + ragged-row paths) with native
    # bf16 inputs (no wrapper-side upcast; cast happens in-kernel).
    shp = (2, 3, 13, 17)
    pred_b = jax.random.uniform(k4, shp, dtype=jnp.float32).astype(jnp.bfloat16)
    target_b = jax.random.uniform(k5, shp, dtype=jnp.float32).astype(jnp.bfloat16)
    wmap_b = jax.random.uniform(k6, shp, dtype=jnp.float32).astype(jnp.bfloat16)

    out_b = jax.block_until_ready(adaptive_wing_loss(pred_b, target_b, wmap_b))
    ref_b = _reference(pred_b, target_b, wmap_b)
    assert jnp.isfinite(out_b), "non-finite loss (bf16)"
    assert jnp.allclose(out_b, ref_b, rtol=1e-5, atol=1e-5), (out_b, ref_b)

    print("KERNEL_OK")
</pallas_src>

<mosaic_0001>
module attributes {stable_mosaic.version = 11 : i64} {
  func.func @_awl_kernel(%arg0: i32, %arg1: i32, %arg2: memref<16x128xf32, #tpu.memory_space<vmem>>, %arg3: memref<16x128xf32, #tpu.memory_space<vmem>>, %arg4: memref<16x128xf32, #tpu.memory_space<vmem>>, %arg5: memref<1x8x128xf32, #tpu.memory_space<vmem>>) attributes {dimension_semantics = [#tpu.dimension_semantics<parallel>, #tpu.dimension_semantics<arbitrary>], iteration_bounds = array<i64: 1, 1>, scalar_prefetch = 0 : i64, scratch_operands = 0 : i64, tpu.core_type = #tpu.core_type<tc>, window_params = [{transform_indices = @transform_0, window_bounds = array<i64: 16, 128>}, {transform_indices = @transform_1, window_bounds = array<i64: 16, 128>}, {transform_indices = @transform_2, window_bounds = array<i64: 16, 128>}, {transform_indices = @transform_3, window_bounds = array<i64: 1, 8, 128>}]} {
    %c0_i32 = arith.constant 0 : i32
    %0 = arith.cmpi eq, %arg1, %c0_i32 : i32
    %1 = arith.extui %0 : i1 to i32
    %c0_i32_0 = arith.constant 0 : i32
    %2 = arith.cmpi ne, %1, %c0_i32_0 : i32
    scf.if %2 {
      %cst = arith.constant 0.000000e+00 : f32
      %9 = vector.broadcast %cst : f32 to vector<1x8x128xf32>
      %c0 = arith.constant 0 : index
      %c0_3 = arith.constant 0 : index
      %c0_4 = arith.constant 0 : index
      %10 = vector.load %arg5[%c0, %c0_3, %c0_4] : memref<1x8x128xf32, #tpu.memory_space<vmem>>, vector<1x8x128xf32>
      tpu.vector_store %arg5[%c0, %c0_3, %c0_4], %9 {strides = array<i32>} : memref<1x8x128xf32, #tpu.memory_space<vmem>>, vector<1x8x128xf32>,
    } else {
    }
    %c1_i32 = arith.constant 1 : i32
    %3 = arith.muli %arg0, %c1_i32 : i32
    %4 = arith.addi %3, %arg1 : i32
    %c16_i32 = arith.constant 16 : i32
    %5 = arith.muli %4, %c16_i32 : i32
    %c16_i32_1 = arith.constant 16 : i32
    %6 = arith.cmpi slt, %5, %c16_i32_1 : i32
    %7 = arith.extui %6 : i1 to i32
    %c0_i32_2 = arith.constant 0 : i32
    %8 = arith.cmpi ne, %7, %c0_i32_2 : i32
    scf.if %8 {
      %c16_i32_3 = arith.constant 16 : i32
      %9 = arith.addi %5, %c16_i32_3 : i32
      %c16_i32_4 = arith.constant 16 : i32
      %10 = arith.cmpi sle, %9, %c16_i32_4 : i32
      %11 = arith.extui %10 : i1 to i32
      %c0_i32_5 = arith.constant 0 : i32
      %12 = arith.cmpi ne, %11, %c0_i32_5 : i32
      scf.if %12 {
        %c0 = arith.constant 0 : index
        %c0_9 = arith.constant 0 : index
        %c0_10 = arith.constant 0 : index
        %17 = vector.load %arg5[%c0, %c0_9, %c0_10] : memref<1x8x128xf32, #tpu.memory_space<vmem>>, vector<1x8x128xf32>
        %cst = arith.constant 0.000000e+00 : f32
        %18 = vector.broadcast %cst : f32 to vector<8x128xf32>
        %c0_i32_11 = arith.constant 0 : i32
        %c16_i32_12 = arith.constant 16 : i32
        %19 = arith.muli %c0_i32_11, %c16_i32_12 : i32
        %20 = tpu.assume_multiple %19, 16 : i32
        %21 = arith.index_cast %20 : i32 to index
        %c0_13 = arith.constant 0 : index
        %22 = vector.load %arg3[%21, %c0_13] : memref<16x128xf32, #tpu.memory_space<vmem>>, vector<16x128xf32>
        %23 = arith.index_cast %20 : i32 to index
        %c0_14 = arith.constant 0 : index
        %24 = vector.load %arg2[%23, %c0_14] : memref<16x128xf32, #tpu.memory_space<vmem>>, vector<16x128xf32>
        %25 = arith.index_cast %20 : i32 to index
        %c0_15 = arith.constant 0 : index
        %26 = vector.load %arg4[%25, %c0_15] : memref<16x128xf32, #tpu.memory_space<vmem>>, vector<16x128xf32>
        %cst_16 = arith.constant 1.000000e+00 : f32
        %27 = vector.broadcast %cst_16 : f32 to vector<16x128xf32>
        %28 = arith.addf %26, %27 : vector<16x128xf32>
        %cst_17 = arith.constant 1.000000e+01 : f32
        %29 = vector.broadcast %cst_17 : f32 to vector<16x128xf32>
        %30 = arith.mulf %29, %28 : vector<16x128xf32>
        %31 = arith.subf %22, %24 : vector<16x128xf32>
        %32 = math.absf %31 : vector<16x128xf32>
        %cst_18 = arith.constant 2.100000e+00 : f32
        %33 = vector.broadcast %cst_18 : f32 to vector<16x128xf32>
        %34 = arith.subf %33, %22 : vector<16x128xf32>
        %cst_19 = arith.constant 5.000000e-01 : f32
        %35 = vector.broadcast %cst_19 : f32 to vector<16x128xf32>
        %36 = arith.cmpf olt, %32, %35 : vector<16x128xf32>
        %cst_20 = arith.constant 0.0714285746 : f32
        %37 = vector.broadcast %cst_20 : f32 to vector<16x128xf32>
        %38 = arith.mulf %32, %37 : vector<16x128xf32>
        %cst_21 = arith.constant 1.000000e-30 : f32
        %39 = vector.broadcast %cst_21 : f32 to vector<16x128xf32>
        %40 = arith.maximumf %38, %39 : vector<16x128xf32>
        %41 = math.log %40 : vector<16x128xf32>
        %cst_22 = arith.constant -0.693147182 : f32
        %42 = vector.broadcast %cst_22 : f32 to vector<16x128xf32>
        %43 = arith.select %36, %41, %42 : vector<16x128xi1>, vector<16x128xf32>
        %44 = arith.mulf %34, %43 : vector<16x128xf32>
        %45 = math.exp %44 : vector<16x128xf32>
        %cst_23 = arith.constant 1.000000e+00 : f32
        %46 = vector.broadcast %cst_23 : f32 to vector<16x128xf32>
        %47 = arith.addf %46, %45 : vector<16x128xf32>
        %48 = math.log %47 : vector<16x128xf32>
        %cst_24 = arith.constant 1.400000e+01 : f32
        %49 = vector.broadcast %cst_24 : f32 to vector<16x128xf32>
        %50 = arith.mulf %49, %48 : vector<16x128xf32>
        %cst_25 = arith.constant 1.000000e+00 : f32
        %51 = vector.broadcast %cst_25 : f32 to vector<16x128xf32>
        %52 = arith.addf %51, %45 : vector<16x128xf32>
        %53 = tpu.reciprocal %52 : vector<16x128xf32> -> vector<16x128xf32>
        %cst_26 = arith.constant 1.400000e+01 : f32
        %54 = vector.broadcast %cst_26 : f32 to vector<16x128xf32>
        %55 = arith.mulf %54, %53 : vector<16x128xf32>
        %56 = arith.mulf %55, %34 : vector<16x128xf32>
        %cst_27 = arith.constant 2.000000e+00 : f32
        %57 = vector.broadcast %cst_27 : f32 to vector<16x128xf32>
        %58 = arith.mulf %45, %57 : vector<16x128xf32>
        %59 = arith.mulf %56, %58 : vector<16x128xf32>
        %cst_28 = arith.constant 5.000000e-01 : f32
        %60 = vector.broadcast %cst_28 : f32 to vector<16x128xf32>
        %61 = arith.subf %32, %60 : vector<16x128xf32>
        %62 = arith.mulf %59, %61 : vector<16x128xf32>
        %63 = arith.addf %62, %50 : vector<16x128xf32>
        %64 = arith.select %36, %50, %63 : vector<16x128xi1>, vector<16x128xf32>
        %65 = arith.mulf %64, %30 : vector<16x128xf32>
        %66 = vector.shape_cast %65 : vector<16x128xf32> to vector<2x8x128xf32>
        %cst_29 = arith.constant dense<0.000000e+00> : vector<8x128xf32>
        %67 = vector.multi_reduction <add>, %66, %cst_29 [0] : vector<2x8x128xf32> to vector<8x128xf32>
        %68 = arith.addf %18, %67 : vector<8x128xf32>
        %c1_i32_30 = arith.constant 1 : i32
        %69 = vector.shape_cast %68 : vector<8x128xf32> to vector<1x8x128xf32>
        %70 = arith.addf %17, %69 : vector<1x8x128xf32>
        %c0_31 = arith.constant 0 : index
        %c0_32 = arith.constant 0 : index
        %c0_33 = arith.constant 0 : index
        %71 = vector.load %arg5[%c0_31, %c0_32, %c0_33] : memref<1x8x128xf32, #tpu.memory_space<vmem>>, vector<1x8x128xf32>
        tpu.vector_store %arg5[%c0_31, %c0_32, %c0_33], %70 {strides = array<i32>} : memref<1x8x128xf32, #tpu.memory_space<vmem>>, vector<1x8x128xf32>,
      } else {
      }
      %c16_i32_6 = arith.constant 16 : i32
      %13 = arith.addi %5, %c16_i32_6 : i32
      %c16_i32_7 = arith.constant 16 : i32
      %14 = arith.cmpi sgt, %13, %c16_i32_7 : i32
      %15 = arith.extui %14 : i1 to i32
      %c0_i32_8 = arith.constant 0 : i32
      %16 = arith.cmpi ne, %15, %c0_i32_8 : i32
      scf.if %16 {
        %c0 = arith.constant 0 : index
        %c0_9 = arith.constant 0 : index
        %c0_10 = arith.constant 0 : index
        %17 = vector.load %arg5[%c0, %c0_9, %c0_10] : memref<1x8x128xf32, #tpu.memory_space<vmem>>, vector<1x8x128xf32>
        %cst = arith.constant 0.000000e+00 : f32
        %18 = vector.broadcast %cst : f32 to vector<8x128xf32>
        %c0_i32_11 = arith.constant 0 : i32
        %c16_i32_12 = arith.constant 16 : i32
        %19 = arith.muli %c0_i32_11, %c16_i32_12 : i32
        %20 = tpu.assume_multiple %19, 16 : i32
        %21 = arith.index_cast %20 : i32 to index
        %c0_13 = arith.constant 0 : index
        %22 = vector.load %arg3[%21, %c0_13] : memref<16x128xf32, #tpu.memory_space<vmem>>, vector<16x128xf32>
        %23 = arith.index_cast %20 : i32 to index
        %c0_14 = arith.constant 0 : index
        %24 = vector.load %arg2[%23, %c0_14] : memref<16x128xf32, #tpu.memory_space<vmem>>, vector<16x128xf32>
        %25 = arith.index_cast %20 : i32 to index
        %c0_15 = arith.constant 0 : index
        %26 = vector.load %arg4[%25, %c0_15] : memref<16x128xf32, #tpu.memory_space<vmem>>, vector<16x128xf32>
        %cst_16 = arith.constant 1.000000e+00 : f32
        %27 = vector.broadcast %cst_16 : f32 to vector<16x128xf32>
        %28 = arith.addf %26, %27 : vector<16x128xf32>
        %cst_17 = arith.constant 1.000000e+01 : f32
        %29 = vector.broadcast %cst_17 : f32 to vector<16x128xf32>
        %30 = arith.mulf %29, %28 : vector<16x128xf32>
        %31 = arith.subf %22, %24 : vector<16x128xf32>
        %32 = math.absf %31 : vector<16x128xf32>
        %cst_18 = arith.constant 2.100000e+00 : f32
        %33 = vector.broadcast %cst_18 : f32 to vector<16x128xf32>
        %34 = arith.subf %33, %22 : vector<16x128xf32>
        %cst_19 = arith.constant 5.000000e-01 : f32
        %35 = vector.broadcast %cst_19 : f32 to vector<16x128xf32>
        %36 = arith.cmpf olt, %32, %35 : vector<16x128xf32>
        %cst_20 = arith.constant 0.0714285746 : f32
        %37 = vector.broadcast %cst_20 : f32 to vector<16x128xf32>
        %38 = arith.mulf %32, %37 : vector<16x128xf32>
        %cst_21 = arith.constant 1.000000e-30 : f32
        %39 = vector.broadcast %cst_21 : f32 to vector<16x128xf32>
        %40 = arith.maximumf %38, %39 : vector<16x128xf32>
        %41 = math.log %40 : vector<16x128xf32>
        %cst_22 = arith.constant -0.693147182 : f32
        %42 = vector.broadcast %cst_22 : f32 to vector<16x128xf32>
        %43 = arith.select %36, %41, %42 : vector<16x128xi1>, vector<16x128xf32>
        %44 = arith.mulf %34, %43 : vector<16x128xf32>
        %45 = math.exp %44 : vector<16x128xf32>
        %cst_23 = arith.constant 1.000000e+00 : f32
        %46 = vector.broadcast %cst_23 : f32 to vector<16x128xf32>
        %47 = arith.addf %46, %45 : vector<16x128xf32>
        %48 = math.log %47 : vector<16x128xf32>
        %cst_24 = arith.constant 1.400000e+01 : f32
        %49 = vector.broadcast %cst_24 : f32 to vector<16x128xf32>
        %50 = arith.mulf %49, %48 : vector<16x128xf32>
        %cst_25 = arith.constant 1.000000e+00 : f32
        %51 = vector.broadcast %cst_25 : f32 to vector<16x128xf32>
        %52 = arith.addf %51, %45 : vector<16x128xf32>
        %53 = tpu.reciprocal %52 : vector<16x128xf32> -> vector<16x128xf32>
        %cst_26 = arith.constant 1.400000e+01 : f32
        %54 = vector.broadcast %cst_26 : f32 to vector<16x128xf32>
        %55 = arith.mulf %54, %53 : vector<16x128xf32>
        %56 = arith.mulf %55, %34 : vector<16x128xf32>
        %cst_27 = arith.constant 2.000000e+00 : f32
        %57 = vector.broadcast %cst_27 : f32 to vector<16x128xf32>
        %58 = arith.mulf %45, %57 : vector<16x128xf32>
        %59 = arith.mulf %56, %58 : vector<16x128xf32>
        %cst_28 = arith.constant 5.000000e-01 : f32
        %60 = vector.broadcast %cst_28 : f32 to vector<16x128xf32>
        %61 = arith.subf %32, %60 : vector<16x128xf32>
        %62 = arith.mulf %59, %61 : vector<16x128xf32>
        %63 = arith.addf %62, %50 : vector<16x128xf32>
        %64 = arith.select %36, %50, %63 : vector<16x128xi1>, vector<16x128xf32>
        %65 = arith.mulf %64, %30 : vector<16x128xf32>
        %66 = tpu.iota {dimensions = array<i32: 0>} : vector<16x128xi32>
        %67 = arith.addi %5, %20 : i32
        %68 = vector.broadcast %67 : i32 to vector<16x128xi32>
        %69 = arith.addi %66, %68 : vector<16x128xi32>
        %c16_i32_29 = arith.constant 16 : i32
        %70 = vector.broadcast %c16_i32_29 : i32 to vector<16x128xi32>
        %71 = arith.cmpi slt, %69, %70 : vector<16x128xi32>
        %cst_30 = arith.constant 0.000000e+00 : f32
        %72 = vector.broadcast %cst_30 : f32 to vector<16x128xf32>
        %73 = arith.select %71, %65, %72 : vector<16x128xi1>, vector<16x128xf32>
        %74 = vector.shape_cast %73 : vector<16x128xf32> to vector<2x8x128xf32>
        %cst_31 = arith.constant dense<0.000000e+00> : vector<8x128xf32>
        %75 = vector.multi_reduction <add>, %74, %cst_31 [0] : vector<2x8x128xf32> to vector<8x128xf32>
        %76 = arith.addf %18, %75 : vector<8x128xf32>
        %c1_i32_32 = arith.constant 1 : i32
        %77 = vector.shape_cast %76 : vector<8x128xf32> to vector<1x8x128xf32>
        %78 = arith.addf %17, %77 : vector<1x8x128xf32>
        %c0_33 = arith.constant 0 : index
        %c0_34 = arith.constant 0 : index
        %c0_35 = arith.constant 0 : index
        %79 = vector.load %arg5[%c0_33, %c0_34, %c0_35] : memref<1x8x128xf32, #tpu.memory_space<vmem>>, vector<1x8x128xf32>
        tpu.vector_store %arg5[%c0_33, %c0_34, %c0_35], %78 {strides = array<i32>} : memref<1x8x128xf32, #tpu.memory_space<vmem>>, vector<1x8x128xf32>,
      } else {
      }
    } else {
    }
    return
  }
  func.func @transform_0(%arg0: i32, %arg1: i32) -> (i32, i32) {
    %c1_i32 = arith.constant 1 : i32
    %0 = arith.muli %arg0, %c1_i32 : i32
    %1 = arith.addi %0, %arg1 : i32
    %c0_i32 = arith.constant 0 : i32
    %2 = arith.minsi %1, %c0_i32 : i32
    %c0_i32_0 = arith.constant 0 : i32
    %c0_i32_1 = arith.constant 0 : i32
    return %2, %c0_i32_0 : i32, i32
  }
  func.func @transform_1(%arg0: i32, %arg1: i32) -> (i32, i32) {
    %c1_i32 = arith.constant 1 : i32
    %0 = arith.muli %arg0, %c1_i32 : i32
    %1 = arith.addi %0, %arg1 : i32
    %c0_i32 = arith.constant 0 : i32
    %2 = arith.minsi %1, %c0_i32 : i32
    %c0_i32_0 = arith.constant 0 : i32
    %c0_i32_1 = arith.constant 0 : i32
    return %2, %c0_i32_0 : i32, i32
  }
  func.func @transform_2(%arg0: i32, %arg1: i32) -> (i32, i32) {
    %c1_i32 = arith.constant 1 : i32
    %0 = arith.muli %arg0, %c1_i32 : i32
    %1 = arith.addi %0, %arg1 : i32
    %c0_i32 = arith.constant 0 : i32
    %2 = arith.minsi %1, %c0_i32 : i32
    %c0_i32_0 = arith.constant 0 : i32
    %c0_i32_1 = arith.constant 0 : i32
    return %2, %c0_i32_0 : i32, i32
  }
  func.func @transform_3(%arg0: i32, %arg1: i32) -> (i32, i32, i32) {
    %c0_i32 = arith.constant 0 : i32
    %c0_i32_0 = arith.constant 0 : i32
    %c0_i32_1 = arith.constant 0 : i32
    return %arg0, %c0_i32, %c0_i32_0 : i32, i32, i32
  }
}

</mosaic_0001>

<llo_original>
// kernel: tpu_custom_call.1
$region0: #{tpu_custom_call.1}
  #allocation0 [shape = 'u32[]', space=smem, size = 0x4, offset = 0x4, fixed_abs, tag = 'smem constant byte address 0x4 - core index']
  #allocation1 [shape = 'u32[72,128]{1,0:T(1,128)}', space=vmem, size = 0x9000, scoped, tag = 'internal scratch']
  %s0 = inlined_call_operand.hbm [shape: f32[16,128], index: 0, kind: input, shape index: {}]
  %s1 = inlined_call_operand.hbm [shape: f32[16,128], index: 1, kind: input, shape index: {}]
  %s2 = inlined_call_operand.hbm [shape: f32[16,128], index: 2, kind: input, shape index: {}]
  %s3 = inlined_call_operand.hbm [shape: f32[1,8,128], index: 3, kind: output, shape index: {}]
  %s4 = sld [smem:[#allocation0]]
  $region50: #{tpu_custom_call.1} parent=0
    _
  %s6 = ssub.s32 1, %s4
  %s7 = scalar_select 0, %s6, %s4
  $region1: #{tpu_custom_call.1} parent=0
    #allocation2 [shape = 'u8[8192]{0}', space=vmem, size = 0x2000, scoped, tag = 'input window, operand 0, single buffered']
    #allocation3 [shape = 's32[1]{0}', space=sflag, size = 0x4, scoped, tag = 'scoped memory for tpu_custom_call.1']
    #allocation4 [shape = 's32[1]{0}', space=sflag, size = 0x4, scoped, tag = 'scoped memory for tpu_custom_call.1']
    #allocation5 [shape = 'u8[8192]{0}', space=vmem, size = 0x2000, scoped, tag = 'input window, operand 1, single buffered']
    #allocation6 [shape = 's32[1]{0}', space=sflag, size = 0x4, scoped, tag = 'scoped memory for tpu_custom_call.1']
    #allocation7 [shape = 'u8[8192]{0}', space=vmem, size = 0x2000, scoped, tag = 'input window, operand 2, single buffered']
    #allocation8 [shape = 'u8[4096]{0}', space=vmem, size = 0x1000, scoped, tag = 'output window, operand 0, single buffered']
    %8 = vsyncpa [#allocation3], 0
    %9 = vsyncpa [#allocation6], 0
    %10 = vsyncpa [#allocation4], 0
    // Predicated region
    $region2: #{tpu_custom_call.1} parent=1 // pred_check
      _
    $region3: #{tpu_custom_call.1} parent=1 // pred_check_branch
      %12 = sbr.rel (0) target = $region5
    $region4: #{tpu_custom_call.1} parent=1 // pred_region
      %s13 = sadd.s32 0, 0
      %p14 = scmp.lt.s32.totalorder %s13, 0
      %s15 = scalar_select %p14, %s13, 0
      %s16 = smul.u32 2, %s15
      %18 = vsyncadd [#allocation3], 0
      %s19 = smul.addr %s16, 8
      %s20 = scalar_lea.hbm %s0, %s19
      %s21 = sshll.u32 %s20, 4
      %s22 = int_to_ptr.hbm [resolvable:$true] %s21
      %s23 = sshll.u32 [#allocation2], 4
      %s24 = int_to_ptr.vmem [resolvable:$true] %s23
      %29 = dma.hbm_to_vmem [thread:$0]  %s22, 256, %s24, [#allocation3], 128, 128, 8
    $region5: #{tpu_custom_call.1} parent=1 // pred_fallthru
      _
    // Predicated region
    $region6: #{tpu_custom_call.1} parent=1 // pred_check
      _
    $region7: #{tpu_custom_call.1} parent=1 // pred_check_branch
      %31 = sbr.rel (0) target = $region9
    $region8: #{tpu_custom_call.1} parent=1 // pred_region
      %s32 = sadd.s32 0, 0
      %p33 = scmp.lt.s32.totalorder %s32, 0
      %s34 = scalar_select %p33, %s32, 0
      %s35 = smul.u32 2, %s34
      %37 = vsyncadd [#allocation6], 0
      %s38 = smul.addr %s35, 8
      %s39 = scalar_lea.hbm %s1, %s38
      %s40 = sshll.u32 %s39, 4
      %s41 = int_to_ptr.hbm [resolvable:$true] %s40
      %s42 = sshll.u32 [#allocation5], 4
      %s43 = int_to_ptr.vmem [resolvable:$true] %s42
      %48 = dma.hbm_to_vmem [thread:$0]  %s41, 256, %s43, [#allocation6], 128, 128, 8
    $region9: #{tpu_custom_call.1} parent=1 // pred_fallthru
      _
    // Predicated region
    $region10: #{tpu_custom_call.1} parent=1 // pred_check
      _
    $region11: #{tpu_custom_call.1} parent=1 // pred_check_branch
      %50 = sbr.rel (0) target = $region13
    $region12: #{tpu_custom_call.1} parent=1 // pred_region
      %s51 = sadd.s32 0, 0
      %p52 = scmp.lt.s32.totalorder %s51, 0
      %s53 = scalar_select %p52, %s51, 0
      %s54 = smul.u32 2, %s53
      %56 = vsyncadd [#allocation6], 0
      %s57 = smul.addr %s54, 8
      %s58 = scalar_lea.hbm %s2, %s57
      %s59 = sshll.u32 %s58, 4
      %s60 = int_to_ptr.hbm [resolvable:$true] %s59
      %s61 = sshll.u32 [#allocation7], 4
      %s62 = int_to_ptr.vmem [resolvable:$true] %s61
      %67 = dma.hbm_to_vmem [thread:$0]  %s60, 256, %s62, [#allocation6], 128, 128, 8
    $region13: #{tpu_custom_call.1} parent=1 // pred_fallthru
      _
    // Predicated region
    $region14: #{tpu_custom_call.1} parent=1 // pred_check
      _
    $region15: #{tpu_custom_call.1} parent=1 // pred_check_branch
      %69 = sbr.rel (0) target = $region17
    $region16: #{tpu_custom_call.1} parent=1 // pred_region
      %71 = dma.done [#allocation3], 256
    $region17: #{tpu_custom_call.1} parent=1 // pred_fallthru
      _
    // Predicated region
    $region18: #{tpu_custom_call.1} parent=1 // pred_check
      _
    $region19: #{tpu_custom_call.1} parent=1 // pred_check_branch
      %73 = sbr.rel (0) target = $region21
    $region20: #{tpu_custom_call.1} parent=1 // pred_region
      %75 = dma.done [#allocation6], 256
    $region21: #{tpu_custom_call.1} parent=1 // pred_fallthru
      _
    // Predicated region
    $region22: #{tpu_custom_call.1} parent=1 // pred_check
      _
    $region23: #{tpu_custom_call.1} parent=1 // pred_check_branch
      %77 = sbr.rel (0) target = $region25
    $region24: #{tpu_custom_call.1} parent=1 // pred_region
      %79 = dma.done [#allocation6], 256
    $region25: #{tpu_custom_call.1} parent=1 // pred_fallthru
      _
    %s80 = sadd.s32 0, 0
    %p81 = scmp.lt.s32.totalorder %s80, 0
    %s82 = scalar_select %p81, %s80, 0
    %s83 = smul.u32 2, %s82
    %s84 = sadd.s32 0, 0
    %p85 = scmp.lt.s32.totalorder %s84, 0
    %s86 = scalar_select %p85, %s84, 0
    %s87 = smul.u32 2, %s86
    %s88 = sadd.s32 0, 0
    %p89 = scmp.lt.s32.totalorder %s88, 0
    %s90 = scalar_select %p89, %s88, 0
    %s91 = smul.u32 2, %s90
    %p92 = scmp.eq.s32.totalorder 0, 0
    // Predicated region
    $region26: #{tpu_custom_call.1} parent=1 // pred_check
      %p93 = pneg %p92
    $region27: #{tpu_custom_call.1} parent=1 // pred_check_branch
      %95 = sbr.rel (%p93) target = $region29
    $region28: #{tpu_custom_call.1} parent=1 // pred_region
      %96 = vst [vmem:[#allocation8] sm:$0xff] 0.0
    $region29: #{tpu_custom_call.1} parent=1 // pred_fallthru
      _
    %s97 = sadd.s32 0, 0
    %s98 = smul.u32 %s97, 16
    %p99 = scmp.lt.s32.totalorder %s98, 16
    // Predicated region
    $region30: #{tpu_custom_call.1} parent=1 // pred_check
      %p100 = pneg %p99
    $region31: #{tpu_custom_call.1} parent=1 // pred_check_branch
      %102 = sbr.rel (%p100) target = $region33
    $region32: #{tpu_custom_call.1} parent=1 // pred_region
      %s103 = sadd.s32 %s98, 16
      %p104 = scmp.le.s32.totalorder %s103, 16
      // Predicated region
      $region34: #{tpu_custom_call.1} parent=32 // pred_check
        %p105 = pneg %p104
      $region35: #{tpu_custom_call.1} parent=32 // pred_check_branch
        %107 = sbr.rel (%p105) target = $region37
      $region36: #{tpu_custom_call.1} parent=32 // pred_region
        %v108 = vld [vmem:[#allocation8] sm:$0xff]
        %v109 = vld [vmem:[#allocation5] sm:$0xff]
        %v110 = vld [vmem:[#allocation5 + $0x8] sm:$0xff]
        %v111 = vld [vmem:[#allocation2] sm:$0xff]
        %v112 = vld [vmem:[#allocation2 + $0x8] sm:$0xff]
        %v113 = vld [vmem:[#allocation7] sm:$0xff]
        %v114 = vld [vmem:[#allocation7 + $0x8] sm:$0xff]
        %v115 = vadd.f32 %v113, 1.0
        %v116 = vadd.f32 %v114, 1.0
        %v117 = vmul.f32 %v115, 10.0
        %v118 = vmul.f32 %v116, 10.0
        %v119 = vsub.f32 %v109, %v111
        %v120 = vsub.f32 %v110, %v112
        %v121 = vand.u32 2147483647, %v119
        %v122 = vand.u32 2147483647, %v120
        %v123 = vsub.f32 2.1, %v109
        %v124 = vsub.f32 2.1, %v110
        %vm125 = vcmp.lt.f32.partialorder %v121, 0.5
        %vm126 = vcmp.lt.f32.partialorder %v122, 0.5
        %v127 = vmul.f32 %v121, 0.071428575
        %v128 = vmul.f32 %v122, 0.071428575
        %v129 = vmax.f32 %v127, 1e-30
        %v130 = vmax.f32 %v128, 1e-30
        %v131 = vlog2.pop %v129
        %v132 = vmul.f32 %v131, 0.6931472
        %v133 = vlog2.pop %v130
        %v134 = vmul.f32 %v133, 0.6931472
        %v135 = vsel %vm125, %v132, -0.6931472
        %v136 = vsel %vm126, %v134, -0.6931472
        %v137 = vmul.f32 %v123, %v135
        %v138 = vmul.f32 %v124, %v136
        %v139 = vmul.f32 %v137, 1.442695
        %v140 = vpow.pop %v139
        %v141 = vmul.f32 %v138, 1.442695
        %v142 = vpow.pop %v141
        %v143 = vadd.f32 %v140, 1.0
        %v144 = vadd.f32 %v142, 1.0
        %v145 = vlog2.pop %v143
        %v146 = vmul.f32 %v145, 0.6931472
        %v147 = vlog2.pop %v144
        %v148 = vmul.f32 %v147, 0.6931472
        %v149 = vmul.f32 %v146, 14.0
        %v150 = vmul.f32 %v148, 14.0
        %v151 = vrcp.pop %v143
        %v152 = vmul.f32 %v143, %v151
        %v153 = vsub.f32 1.0, %v152
        %v154 = vmul.f32 %v151, %v153
        %v155 = vadd.f32 %v151, %v154
        %vm156 = vweird.f32 %v143
        %vm157 = vweird.f32 %v151
        %vm158 = vmor %vm156, %vm157
        %v159 = vsel %vm158, %v151, %v155
        %v160 = vand.u32 2147483647, %v143
        %vm161 = vcmp.eq.f32.partialorder %v160, 8.507059e+37
        %v162 = vand.u32 %v143, 2147483648
        %v163 = vor.u32 1.1754944e-38, %v162
        %v164 = vsel %vm161, %v163, %v159
        %v165 = vrcp.pop %v144
        %v166 = vmul.f32 %v144, %v165
        %v167 = vsub.f32 1.0, %v166
        %v168 = vmul.f32 %v165, %v167
        %v169 = vadd.f32 %v165, %v168
        %vm170 = vweird.f32 %v144
        %vm171 = vweird.f32 %v165
        %vm172 = vmor %vm170, %vm171
        %v173 = vsel %vm172, %v165, %v169
        %v174 = vand.u32 2147483647, %v144
        %vm175 = vcmp.eq.f32.partialorder %v174, 8.507059e+37
        %v176 = vand.u32 %v144, 2147483648
        %v177 = vor.u32 1.1754944e-38, %v176
        %v178 = vsel %vm175, %v177, %v173
        %v179 = vmul.f32 %v164, 14.0
        %v180 = vmul.f32 %v178, 14.0
        %v181 = vmul.f32 %v179, %v123
        %v182 = vmul.f32 %v180, %v124
        %v183 = vmul.f32 %v140, 2.0
        %v184 = vmul.f32 %v142, 2.0
        %v185 = vmul.f32 %v181, %v183
        %v186 = vmul.f32 %v182, %v184
        %v187 = vsub.f32 %v121, 0.5
        %v188 = vsub.f32 %v122, 0.5
        %v189 = vmul.f32 %v185, %v187
        %v190 = vmul.f32 %v186, %v188
        %v191 = vadd.f32 %v189, %v149
        %v192 = vadd.f32 %v190, %v150
        %v193 = vsel %vm125, %v149, %v191
        %v194 = vsel %vm126, %v150, %v192
        %v195 = vmul.f32 %v193, %v117
        %v196 = vmul.f32 %v194, %v118
        %v197 = vadd.f32 %v195, %v196
        %v198 = vadd.f32 %v197, 0.0
        %v199 = vadd.f32 %v108, %v198
        %200 = vst [vmem:[#allocation8] sm:$0xff] %v199
      $region37: #{tpu_custom_call.1} parent=32 // pred_fallthru
        _
      %p201 = scmp.gt.s32.totalorder %s103, 16
      // Predicated region
      $region38: #{tpu_custom_call.1} parent=32 // pred_check
        %p202 = pneg %p201
      $region39: #{tpu_custom_call.1} parent=32 // pred_check_branch
        %204 = sbr.rel (%p202) target = $region41
      $region40: #{tpu_custom_call.1} parent=32 // pred_region
        %v205 = vld [vmem:[#allocation8] sm:$0xff]
        %v206 = vld [vmem:[#allocation5] sm:$0xff]
        %v207 = vld [vmem:[#allocation5 + $0x8] sm:$0xff]
        %v208 = vld [vmem:[#allocation2] sm:$0xff]
        %v209 = vld [vmem:[#allocation2 + $0x8] sm:$0xff]
        %v210 = vld [vmem:[#allocation7] sm:$0xff]
        %v211 = vld [vmem:[#allocation7 + $0x8] sm:$0xff]
        %v212 = vadd.f32 %v210, 1.0
        %v213 = vadd.f32 %v211, 1.0
        %v214 = vmul.f32 %v212, 10.0
        %v215 = vmul.f32 %v213, 10.0
        %v216 = vsub.f32 %v206, %v208
        %v217 = vsub.f32 %v207, %v209
        %v218 = vand.u32 2147483647, %v216
        %v219 = vand.u32 2147483647, %v217
        %v220 = vsub.f32 2.1, %v206
        %v221 = vsub.f32 2.1, %v207
        %vm222 = vcmp.lt.f32.partialorder %v218, 0.5
        %vm223 = vcmp.lt.f32.partialorder %v219, 0.5
        %v224 = vmul.f32 %v218, 0.071428575
        %v225 = vmul.f32 %v219, 0.071428575
        %v226 = vmax.f32 %v224, 1e-30
        %v227 = vmax.f32 %v225, 1e-30
        %v228 = vlog2.pop %v226
        %v229 = vmul.f32 %v228, 0.6931472
        %v230 = vlog2.pop %v227
        %v231 = vmul.f32 %v230, 0.6931472
        %v232 = vsel %vm222, %v229, -0.6931472
        %v233 = vsel %vm223, %v231, -0.6931472
        %v234 = vmul.f32 %v220, %v232
        %v235 = vmul.f32 %v221, %v233
        %v236 = vmul.f32 %v234, 1.442695
        %v237 = vpow.pop %v236
        %v238 = vmul.f32 %v235, 1.442695
        %v239 = vpow.pop %v238
        %v240 = vadd.f32 %v237, 1.0
        %v241 = vadd.f32 %v239, 1.0
        %v242 = vlog2.pop %v240
        %v243 = vmul.f32 %v242, 0.6931472
        %v244 = vlog2.pop %v241
        %v245 = vmul.f32 %v244, 0.6931472
        %v246 = vmul.f32 %v243, 14.0
        %v247 = vmul.f32 %v245, 14.0
        %v248 = vrcp.pop %v240
        %v249 = vmul.f32 %v240, %v248
        %v250 = vsub.f32 1.0, %v249
        %v251 = vmul.f32 %v248, %v250
        %v252 = vadd.f32 %v248, %v251
        %vm253 = vweird.f32 %v240
        %vm254 = vweird.f32 %v248
        %vm255 = vmor %vm253, %vm254
        %v256 = vsel %vm255, %v248, %v252
        %v257 = vand.u32 2147483647, %v240
        %vm258 = vcmp.eq.f32.partialorder %v257, 8.507059e+37
        %v259 = vand.u32 %v240, 2147483648
        %v260 = vor.u32 1.1754944e-38, %v259
        %v261 = vsel %vm258, %v260, %v256
        %v262 = vrcp.pop %v241
        %v263 = vmul.f32 %v241, %v262
        %v264 = vsub.f32 1.0, %v263
        %v265 = vmul.f32 %v262, %v264
        %v266 = vadd.f32 %v262, %v265
        %vm267 = vweird.f32 %v241
        %vm268 = vweird.f32 %v262
        %vm269 = vmor %vm267, %vm268
        %v270 = vsel %vm269, %v262, %v266
        %v271 = vand.u32 2147483647, %v241
        %vm272 = vcmp.eq.f32.partialorder %v271, 8.507059e+37
        %v273 = vand.u32 %v241, 2147483648
        %v274 = vor.u32 1.1754944e-38, %v273
        %v275 = vsel %vm272, %v274, %v270
        %v276 = vmul.f32 %v261, 14.0
        %v277 = vmul.f32 %v275, 14.0
        %v278 = vmul.f32 %v276, %v220
        %v279 = vmul.f32 %v277, %v221
        %v280 = vmul.f32 %v237, 2.0
        %v281 = vmul.f32 %v239, 2.0
        %v282 = vmul.f32 %v278, %v280
        %v283 = vmul.f32 %v279, %v281
        %v284 = vsub.f32 %v218, 0.5
        %v285 = vsub.f32 %v219, 0.5
        %v286 = vmul.f32 %v282, %v284
        %v287 = vmul.f32 %v283, %v285
        %v288 = vadd.f32 %v286, %v246
        %v289 = vadd.f32 %v287, %v247
        %v290 = vsel %vm222, %v246, %v288
        %v291 = vsel %vm223, %v247, %v289
        %v292 = vmul.f32 %v290, %v214
        %v293 = vmul.f32 %v291, %v215
        %v294 = vlaneseq
        %v295 = vshrl.u32 %v294, 7
        %v296 = vadd.s32 %v295, 8
        %s297 = sadd.s32 %s98, 0
        %v298 = vstv %s297
        %v299 = vadd.s32 %v295, %v298
        %v300 = vadd.s32 %v296, %v298
        %vm301 = vcmp.lt.s32.totalorder %v299, 16
        %vm302 = vcmp.lt.s32.totalorder %v300, 16
        %v303 = vsel %vm301, %v292, 0.0
        %v304 = vsel %vm302, %v293, 0.0
        %v305 = vadd.f32 %v303, %v304
        %v306 = vadd.f32 %v305, 0.0
        %v307 = vadd.f32 %v205, %v306
        %308 = vst [vmem:[#allocation8] sm:$0xff] %v307
      $region41: #{tpu_custom_call.1} parent=32 // pred_fallthru
        _
    $region33: #{tpu_custom_call.1} parent=1 // pred_fallthru
      _
    // Predicated region
    $region42: #{tpu_custom_call.1} parent=1 // pred_check
      _
    $region43: #{tpu_custom_call.1} parent=1 // pred_check_branch
      %310 = sbr.rel (0) target = $region45
    $region44: #{tpu_custom_call.1} parent=1 // pred_region
      %312 = vsyncadd [#allocation4], 0
      %s314 = sshll.u32 [#allocation8], 4
      %s315 = int_to_ptr.vmem [resolvable:$true] %s314
      %s316 = sshll.u32 %s3, 4
      %s317 = int_to_ptr.hbm [resolvable:$true] %s316
      %319 = dma.vmem_to_hbm [thread:$0]  %s315, 128, %s317, [#allocation4]
    $region45: #{tpu_custom_call.1} parent=1 // pred_fallthru
      _
    // Predicated region
    $region46: #{tpu_custom_call.1} parent=1 // pred_check
      _
    $region47: #{tpu_custom_call.1} parent=1 // pred_check_branch
      %321 = sbr.rel (0) target = $region49
    $region48: #{tpu_custom_call.1} parent=1 // pred_region
      %323 = dma.done [#allocation4], 128
    $region49: #{tpu_custom_call.1} parent=1 // pred_fallthru
      _
    %324 = vsyncpa [#allocation3], 1
    %325 = vsyncpa [#allocation6], 1
    %326 = vsyncpa [#allocation4], 1

</llo_original>
